<compile_context>
chip_gen: v6e
topology: v6e:2x2x1
jax: 0.10.0
libtpu: 0.0.40
codegen_flags: <defaults>
</compile_context>

<pallas_src>
import functools
import math

import numpy as np
import jax
import jax.numpy as jnp
from jax.experimental import pallas as pl
from jax.experimental.pallas import tpu as pltpu


# ---------------------------------------------------------------------------
# PE buffer construction — exact replica of PositionalEncoder.__init__
# ---------------------------------------------------------------------------
def build_positional_encoding(d_map=14, d_model=384):
    pe = np.zeros((d_map, d_model), dtype=np.float64)
    for pos in range(d_map):
        for i in range(0, d_model, 2):
            pe[pos, i] = math.sin(pos / 10000 ** (2 * i / d_model))
            pe[pos, i + 1] = math.cos(pos / 10000 ** (2 * (i + 1) / d_model))
    PE = np.zeros((d_map, d_map, d_model * 2), dtype=np.float64)
    for xx in range(d_map):
        for yy in range(d_map):
            PE[xx, yy, 0:d_model] = pe[xx, :]
            PE[xx, yy, d_model:] = pe[yy, :]
    PE = PE.reshape(-1, PE.shape[-1])            # (d_map*d_map, 2*d_model)
    PE = PE[None, ...].astype(np.float32)        # .float().unsqueeze(0) -> (1, S, D)
    return jnp.asarray(PE)


# ---------------------------------------------------------------------------
# Pallas kernel: fused  out = x + beta * PE   (PE broadcast over batch via index_map)
# ---------------------------------------------------------------------------
def _add_pe_kernel(x_ref, pe_ref, o_ref, *, beta):
    # x_ref / o_ref : (1, TS, TD) tile of x;  pe_ref : matching tile of the (1, S, D) buffer
    o_ref[...] = (x_ref[...] + beta * pe_ref[...]).astype(o_ref.dtype)


def _pick_tile(dim, align, max_tile):
    # Block dims must be a multiple of the (sublane=8 / lane=128) alignment, or span the
    # full array dim. Small / ragged dims -> take the whole dim; large aligned dims -> tile.
    if dim <= max_tile or dim % align != 0:
        return dim
    return max_tile  # max_tile is itself a multiple of `align`


@functools.partial(jax.jit, static_argnames=("beta",))
def positional_encoder_forward(x, pe, *, beta):
    B, S, D = x.shape
    assert pe.shape == (1, S, D), (pe.shape, x.shape)

    TS = _pick_tile(S, 8, 256)      # sublane axis
    TD = _pick_tile(D, 128, 2048)   # lane axis (keep >=128-wide, lane-dense stores)
    grid = (B, pl.cdiv(S, TS), pl.cdiv(D, TD))

    itemsize = jnp.dtype(x.dtype).itemsize
    cost = pl.CostEstimate(
        flops=2 * B * S * D,                              # one mul + one add per element
        transcendentals=0,
        bytes_accessed=(2 * B * S * D + S * D) * itemsize,  # read x, write out, read PE once
    )

    return pl.pallas_call(
        functools.partial(_add_pe_kernel, beta=float(beta)),
        out_shape=jax.ShapeDtypeStruct((B, S, D), x.dtype),
        grid=grid,
        in_specs=[
            pl.BlockSpec((1, TS, TD), lambda b, s, d: (b, s, d)),   # x tile
            pl.BlockSpec((1, TS, TD), lambda b, s, d: (0, s, d)),   # PE tile (batch-broadcast)
        ],
        out_specs=pl.BlockSpec((1, TS, TD), lambda b, s, d: (b, s, d)),
        compiler_params=pltpu.CompilerParams(
            dimension_semantics=("parallel", "parallel", "parallel"),
            vmem_limit_bytes=32 * 1024 * 1024,  # safe on v5e/v6e (128 MiB) and v7x (64 MiB)
        ),
        cost_estimate=cost,
    )(x, pe)


# ---------------------------------------------------------------------------
# Demo / correctness check
# ---------------------------------------------------------------------------
if __name__ == "__main__":
    # Module defaults: d_model = 768 // 2 = 384, d_map = 14  ->  x: (B, 196, 768)
    d_model = 768 // 2
    d_map = 14
    beta = 0.5
    B = 2

    pe = build_positional_encoding(d_map=d_map, d_model=d_model)       # (1, 196, 768)
    x = jax.random.normal(jax.random.PRNGKey(0),
                          (B, d_map * d_map, 2 * d_model), jnp.float32)

    y = positional_encoder_forward(x, pe, beta=beta)
    y = jax.block_until_ready(y)

    # Reference (same math as the PyTorch forward)
    y_ref = x + beta * pe

    assert y.shape == (B, d_map * d_map, 2 * d_model), y.shape
    assert bool(jnp.all(jnp.isfinite(y)))
    assert bool(jnp.allclose(y, y_ref, atol=1e-6, rtol=1e-6))
    print("KERNEL_OK")
</pallas_src>

<mosaic_0001>
module attributes {stable_mosaic.version = 11 : i64} {
  func.func @_add_pe_kernel(%arg0: i32, %arg1: i32, %arg2: i32, %arg3: memref<1x196x768xf32, #tpu.memory_space<vmem>>, %arg4: memref<1x196x768xf32, #tpu.memory_space<vmem>>, %arg5: memref<1x196x768xf32, #tpu.memory_space<vmem>>) attributes {dimension_semantics = [#tpu.dimension_semantics<parallel>, #tpu.dimension_semantics<parallel>, #tpu.dimension_semantics<parallel>], iteration_bounds = array<i64: 2, 1, 1>, scalar_prefetch = 0 : i64, scratch_operands = 0 : i64, tpu.core_type = #tpu.core_type<tc>, window_params = [{transform_indices = @transform_0, window_bounds = array<i64: 1, 196, 768>}, {transform_indices = @transform_1, window_bounds = array<i64: 1, 196, 768>}, {transform_indices = @transform_2, window_bounds = array<i64: 1, 196, 768>}]} {
    %c0 = arith.constant 0 : index
    %c0_0 = arith.constant 0 : index
    %c0_1 = arith.constant 0 : index
    %0 = vector.load %arg3[%c0, %c0_0, %c0_1] : memref<1x196x768xf32, #tpu.memory_space<vmem>>, vector<1x196x768xf32>
    %c0_2 = arith.constant 0 : index
    %c0_3 = arith.constant 0 : index
    %c0_4 = arith.constant 0 : index
    %1 = vector.load %arg4[%c0_2, %c0_3, %c0_4] : memref<1x196x768xf32, #tpu.memory_space<vmem>>, vector<1x196x768xf32>
    %cst = arith.constant 5.000000e-01 : f32
    %2 = vector.broadcast %cst : f32 to vector<1x196x768xf32>
    %3 = arith.mulf %2, %1 : vector<1x196x768xf32>
    %4 = arith.addf %0, %3 : vector<1x196x768xf32>
    %c0_5 = arith.constant 0 : index
    %c0_6 = arith.constant 0 : index
    %c0_7 = arith.constant 0 : index
    %5 = vector.load %arg5[%c0_5, %c0_6, %c0_7] : memref<1x196x768xf32, #tpu.memory_space<vmem>>, vector<1x196x768xf32>
    tpu.vector_store %arg5[%c0_5, %c0_6, %c0_7], %4 {strides = array<i32>} : memref<1x196x768xf32, #tpu.memory_space<vmem>>, vector<1x196x768xf32>,
    return
  }
  func.func @transform_0(%arg0: i32, %arg1: i32, %arg2: i32) -> (i32, i32, i32) {
    %c0_i32 = arith.constant 0 : i32
    return %arg0, %arg1, %arg2 : i32, i32, i32
  }
  func.func @transform_1(%arg0: i32, %arg1: i32, %arg2: i32) -> (i32, i32, i32) {
    %c0_i32 = arith.constant 0 : i32
    %c0_i32_0 = arith.constant 0 : i32
    return %c0_i32, %arg1, %arg2 : i32, i32, i32
  }
  func.func @transform_2(%arg0: i32, %arg1: i32, %arg2: i32) -> (i32, i32, i32) {
    %c0_i32 = arith.constant 0 : i32
    return %arg0, %arg1, %arg2 : i32, i32, i32
  }
}

</mosaic_0001>

<llo_original>
// kernel: positional_encoder_forward.1
$region0: #{positional_encoder_forward.1}
  #allocation0 [shape = 'u32[]', space=smem, size = 0x4, offset = 0x4, fixed_abs, tag = 'smem constant byte address 0x4 - core index']
  #allocation1 [shape = 'u32[144,128]{1,0:T(1,128)}', space=vmem, size = 0x12000, scoped, tag = 'internal scratch']
  %s0 = inlined_call_operand.vmem [shape: f32[2,196,768], index: 0, kind: input, shape index: {}]
  %s1 = inlined_call_operand.vmem [shape: f32[1,196,768], index: 1, kind: input, shape index: {}]
  %s2 = inlined_call_operand.vmem [shape: f32[2,196,768], index: 2, kind: output, shape index: {}]
  %s3 = sld [smem:[#allocation0]]
  $region41: #{positional_encoder_forward.1} parent=0
    _
  %s5 = ssub.s32 1, %s3
  %s6 = scalar_select 0, %s5, %s3
  loop: start=0, step=1, limit=4
  $region2: #{positional_encoder_forward.1} parent=0 // loop_pre_header
    _
  $region3: #{positional_encoder_forward.1} parent=0 // loop_header
    %s8 = sphi 0, %s12
    %p9 = scmp.ge.s32.totalorder %s8, 4
    %s15 = sphi 0, %s34
    %s16 = sphi 0, %s30
    %s17 = sphi 0, %s26
    %s18 = sphi 0, %s15
    %s19 = sphi 0, %s16
    %s20 = sphi 0, %s17
    %s21 = sphi 0, %s18
    %s22 = sphi 0, %s19
    %s23 = sphi 0, %s20
    %s41 = sphi 0, %s43
    %s44 = sphi 0, %s41
    %s45 = sphi 0, %s44
    %s61 = sphi 0, %s45
    %s69 = sphi 0, %s71
    %s72 = sphi 0, %s69
    %s73 = sphi 0, %s72
    %s89 = sphi 0, %s73
    %s99 = sphi 0, %s101
    %s102 = sphi 0, %s99
    %s103 = sphi 0, %s102
    %s119 = sphi 0, %s103
  $region4: #{positional_encoder_forward.1} parent=0 // loop_header_branch
    %11 = sbr.rel (%p9) target = $region8
  $region5: #{positional_encoder_forward.1} parent=0 // loop_body
    %s13 = ssub.s32 %s8, 1
    %s14 = ssub.s32 %s8, 2
    %s24 = sadd.s32 1, %s17
    %p25 = scmp.ge.s32.totalorder %s24, 1
    %s26 = scalar_select %p25, 0, %s24
    %s27 = sadd.s32 1, %s16
    %s28 = scalar_select %p25, %s27, %s16
    %p29 = scmp.ge.s32.totalorder %s28, 1
    %s30 = scalar_select %p29, 0, %s28
    %s31 = sadd.s32 1, %s15
    %s32 = scalar_select %p29, %s31, %s15
    %p33 = scmp.ge.s32.totalorder %s32, 2
    %s34 = scalar_select %p33, 0, %s32
    %s35 = ssub.s32 %s15, %s34
    %s36 = ssub.s32 %s16, %s30
    %s37 = sor.u32 %s35, %s36
    %s38 = ssub.s32 %s17, %s26
    %s39 = sor.u32 %s37, %s38
    %p40 = scmp.eq.s32.totalorder %s39, 0
    %s42 = sadd.s32 %s41, 1
    %s43 = scalar_select %p40, %s41, %s42
    %p46 = pneg %p40
    %p47 = scmp.eq.s32.totalorder %s8, 1
    %p48 = por %p46, %p47
    %p49 = scmp.ne.s32.totalorder %s41, %s44
    %p50 = scmp.eq.s32.totalorder %s8, 0
    %p51 = por %p49, %p50
    %p52 = scmp.ne.s32.totalorder %s41, %s44
    %p53 = scmp.eq.s32.totalorder %s13, 1
    %p54 = por %p52, %p53
    %p55 = scmp.ne.s32.totalorder %s44, %s45
    %p56 = scmp.eq.s32.totalorder %s13, 0
    %p57 = por %p55, %p56
    %p58 = scmp.ne.s32.totalorder %s44, %s45
    %p59 = scmp.eq.s32.totalorder %s14, 1
    %p60 = por %p58, %p59
    %p62 = scmp.ne.s32.totalorder %s45, %s61
    %p63 = scmp.eq.s32.totalorder %s14, 0
    %p64 = por %p62, %p63
    %s65 = ssub.s32 %s16, %s30
    %s66 = ssub.s32 %s17, %s26
    %s67 = sor.u32 %s65, %s66
    %p68 = scmp.eq.s32.totalorder %s67, 0
    %s70 = sadd.s32 %s69, 1
    %s71 = scalar_select %p68, %s69, %s70
    %p74 = pneg %p68
    %p75 = scmp.eq.s32.totalorder %s8, 1
    %p76 = por %p74, %p75
    %p77 = scmp.ne.s32.totalorder %s69, %s72
    %p78 = scmp.eq.s32.totalorder %s8, 0
    %p79 = por %p77, %p78
    %p80 = scmp.ne.s32.totalorder %s69, %s72
    %p81 = scmp.eq.s32.totalorder %s13, 1
    %p82 = por %p80, %p81
    %p83 = scmp.ne.s32.totalorder %s72, %s73
    %p84 = scmp.eq.s32.totalorder %s13, 0
    %p85 = por %p83, %p84
    %p86 = scmp.ne.s32.totalorder %s72, %s73
    %p87 = scmp.eq.s32.totalorder %s14, 1
    %p88 = por %p86, %p87
    %p90 = scmp.ne.s32.totalorder %s73, %s89
    %p91 = scmp.eq.s32.totalorder %s14, 0
    %p92 = por %p90, %p91
    %s93 = ssub.s32 %s15, %s34
    %s94 = ssub.s32 %s16, %s30
    %s95 = sor.u32 %s93, %s94
    %s96 = ssub.s32 %s17, %s26
    %s97 = sor.u32 %s95, %s96
    %p98 = scmp.eq.s32.totalorder %s97, 0
    %s100 = sadd.s32 %s99, 1
    %s101 = scalar_select %p98, %s99, %s100
    %p104 = pneg %p98
    %p105 = scmp.eq.s32.totalorder %s8, 1
    %p106 = por %p104, %p105
    %p107 = scmp.ne.s32.totalorder %s99, %s102
    %p108 = scmp.eq.s32.totalorder %s8, 0
    %p109 = por %p107, %p108
    %p110 = scmp.ne.s32.totalorder %s99, %s102
    %p111 = scmp.eq.s32.totalorder %s13, 1
    %p112 = por %p110, %p111
    %p113 = scmp.ne.s32.totalorder %s102, %s103
    %p114 = scmp.eq.s32.totalorder %s13, 0
    %p115 = por %p113, %p114
    %p116 = scmp.ne.s32.totalorder %s102, %s103
    %p117 = scmp.eq.s32.totalorder %s14, 1
    %p118 = por %p116, %p117
    %p120 = scmp.ne.s32.totalorder %s103, %s119
    %p121 = scmp.eq.s32.totalorder %s14, 0
    %p122 = por %p120, %p121
    %p123 = scmp.le.s32.totalorder 1, %s8
    %p124 = scmp.lt.s32.totalorder %s8, 3
    %p125 = pnand %p123, %p124
    %p126 = pneg %p125
    // Predicated region
    $region9: #{positional_encoder_forward.1} parent=5 // pred_check
      _
    $region10: #{positional_encoder_forward.1} parent=5 // pred_check_branch
      %128 = sbr.rel (%p125) target = $region12
    $region11: #{positional_encoder_forward.1} parent=5 // pred_region
      %s129 = ssub.s32 %s8, 1
      // Predicated region
      $region13: #{positional_encoder_forward.1} parent=11 // pred_check
        %p130 = pneg %p85
      $region14: #{positional_encoder_forward.1} parent=11 // pred_check_branch
        %132 = sbr.rel (%p130) target = $region16
      $region15: #{positional_encoder_forward.1} parent=11 // pred_region
        %s133 = smul.u32 25, %s19
        %s134 = smul.u32 6, %s20
        %p135 = scmp.lt.s32.totalorder %s133, 24
        %s136 = scalar_select %p135, %s133, 24
        %p137 = scmp.lt.s32.totalorder %s134, 5
        %s138 = scalar_select %p137, %s134, 5
        %s139 = smul.addr %s136, 6
        %s140 = sadd.s32 %s138, %s139
        %s141 = smul.addr %s140, 8
        %s142 = scalar_lea.vmem %s1, %s141
        %s143 = smul.u32 25, %s19
        %s144 = smul.u32 6, %s20
      $region16: #{positional_encoder_forward.1} parent=11 // pred_fallthru
        _
    $region12: #{positional_encoder_forward.1} parent=5 // pred_fallthru
      _
    %p145 = scmp.lt.s32.totalorder %s8, 2
    // Predicated region
    $region17: #{positional_encoder_forward.1} parent=5 // pred_check
      %p146 = pneg %p145
    $region18: #{positional_encoder_forward.1} parent=5 // pred_check_branch
      %148 = sbr.rel (%p146) target = $region20
    $region19: #{positional_encoder_forward.1} parent=5 // pred_region
      // Predicated region
      $region21: #{positional_encoder_forward.1} parent=19 // pred_check
        %p149 = pneg %p51
      $region22: #{positional_encoder_forward.1} parent=19 // pred_check_branch
        %151 = sbr.rel (%p149) target = $region24
      $region23: #{positional_encoder_forward.1} parent=19 // pred_region
        %s152 = smul.u32 25, %s16
        %s153 = smul.u32 6, %s17
        %p154 = scmp.lt.s32.totalorder %s15, 1
        %s155 = scalar_select %p154, %s15, 1
        %p156 = scmp.lt.s32.totalorder %s152, 24
        %s157 = scalar_select %p156, %s152, 24
        %p158 = scmp.lt.s32.totalorder %s153, 5
        %s159 = scalar_select %p158, %s153, 5
        %s160 = smul.addr %s157, 6
        %s161 = sadd.s32 %s159, %s160
        %s162 = smul.addr %s155, 150
        %s163 = sadd.s32 %s161, %s162
        %s164 = smul.addr %s163, 8
        %s165 = scalar_lea.vmem %s0, %s164
        %s166 = smul.u32 25, %s16
        %s167 = smul.u32 6, %s17
      $region24: #{positional_encoder_forward.1} parent=19 // pred_fallthru
        _
    $region20: #{positional_encoder_forward.1} parent=5 // pred_fallthru
      _
    %p168 = scmp.le.s32.totalorder 1, %s8
    %p169 = scmp.lt.s32.totalorder %s8, 3
    %p170 = pnand %p168, %p169
    %p171 = pneg %p170
    // Predicated region
    $region25: #{positional_encoder_forward.1} parent=5 // pred_check
      _
    $region26: #{positional_encoder_forward.1} parent=5 // pred_check_branch
      %173 = sbr.rel (%p170) target = $region28
    $region27: #{positional_encoder_forward.1} parent=5 // pred_region
      %s174 = ssub.s32 %s8, 1
      %s175 = smul.u32 25, %s19
      %s176 = smul.u32 6, %s20
      %p177 = scmp.lt.s32.totalorder %s18, 1
      %s178 = scalar_select %p177, %s18, 1
      %p179 = scmp.lt.s32.totalorder %s175, 24
      %s180 = scalar_select %p179, %s175, 24
      %p181 = scmp.lt.s32.totalorder %s176, 5
      %s182 = scalar_select %p181, %s176, 5
      %s183 = smul.addr %s180, 6
      %s184 = sadd.s32 %s182, %s183
      %s185 = smul.addr %s178, 150
      %s186 = sadd.s32 %s184, %s185
      %s187 = smul.addr %s186, 8
      %s188 = scalar_lea.vmem %s0, %s187
      %p189 = pneg %p57
      %p190 = pneg %p54
      %s191 = smul.u32 25, %s19
      %s192 = smul.u32 6, %s20
      %p193 = scmp.lt.s32.totalorder %s191, 24
      %s194 = scalar_select %p193, %s191, 24
      %p195 = scmp.lt.s32.totalorder %s192, 5
      %s196 = scalar_select %p195, %s192, 5
      %s197 = smul.addr %s194, 6
      %s198 = sadd.s32 %s196, %s197
      %s199 = smul.addr %s198, 8
      %s200 = scalar_lea.vmem %s1, %s199
      %p201 = pneg %p85
      %p202 = pneg %p82
      %p203 = pneg %p115
      %p204 = pneg %p112
      %s205 = smul.u32 25, %s19
      %s206 = smul.u32 6, %s20
      %p207 = scmp.lt.s32.totalorder %s18, 1
      %s208 = scalar_select %p207, %s18, 1
      %p209 = scmp.lt.s32.totalorder %s205, 24
      %s210 = scalar_select %p209, %s205, 24
      %p211 = scmp.lt.s32.totalorder %s206, 5
      %s212 = scalar_select %p211, %s206, 5
      %s213 = smul.addr %s210, 6
      %s214 = sadd.s32 %s212, %s213
      %s215 = smul.addr %s208, 150
      %s216 = sadd.s32 %s214, %s215
      %s217 = smul.addr %s216, 8
      %s218 = scalar_lea.vmem %s2, %s217
      %s219 = smul.u32 25, %s19
      %s220 = smul.u32 6, %s20
      %p221 = scmp.lt.s32.totalorder %s18, 1
      %s222 = scalar_select %p221, %s18, 1
      %p223 = scmp.lt.s32.totalorder %s219, 24
      %s224 = scalar_select %p223, %s219, 24
      %p225 = scmp.lt.s32.totalorder %s220, 5
      %s226 = scalar_select %p225, %s220, 5
      %s227 = smul.addr %s224, 6
      %s228 = sadd.s32 %s226, %s227
      %s229 = smul.addr %s222, 150
      %s230 = sadd.s32 %s228, %s229
      %s231 = smul.addr %s230, 8
      %s232 = scalar_lea.vmem %s0, %s231
      %s233 = smul.u32 25, %s19
      %s234 = smul.u32 6, %s20
      %s235 = smul.u32 25, %s19
      %s236 = smul.u32 6, %s20
      %p237 = scmp.lt.s32.totalorder %s235, 24
      %s238 = scalar_select %p237, %s235, 24
      %p239 = scmp.lt.s32.totalorder %s236, 5
      %s240 = scalar_select %p239, %s236, 5
      %s241 = smul.addr %s238, 6
      %s242 = sadd.s32 %s240, %s241
      %s243 = smul.addr %s242, 8
      %s244 = scalar_lea.vmem %s1, %s243
      %s245 = smul.u32 25, %s19
      %s246 = smul.u32 6, %s20
      %s247 = smul.u32 25, %s19
      %s248 = smul.u32 6, %s20
      %p249 = scmp.lt.s32.totalorder %s18, 1
      %s250 = scalar_select %p249, %s18, 1
      %p251 = scmp.lt.s32.totalorder %s247, 24
      %s252 = scalar_select %p251, %s247, 24
      %p253 = scmp.lt.s32.totalorder %s248, 5
      %s254 = scalar_select %p253, %s248, 5
      %s255 = smul.addr %s252, 6
      %s256 = sadd.s32 %s254, %s255
      %s257 = smul.addr %s250, 150
      %s258 = sadd.s32 %s256, %s257
      %s259 = smul.addr %s258, 8
      %s260 = scalar_lea.vmem %s2, %s259
      %s261 = smul.u32 25, %s19
      %s262 = smul.u32 6, %s20
      %v263 = vld [vmem:[%s232] sm:$0xff]
      %v264 = vld [vmem:[%s232 + $0x8] sm:$0xff]
      %v265 = vld [vmem:[%s232 + $0x10] sm:$0xff]
      %v266 = vld [vmem:[%s232 + $0x18] sm:$0xff]
      %v267 = vld [vmem:[%s232 + $0x20] sm:$0xff]
      %v268 = vld [vmem:[%s232 + $0x28] sm:$0xff]
      %v269 = vld [vmem:[%s232 + $0x30] sm:$0xff]
      %v270 = vld [vmem:[%s232 + $0x38] sm:$0xff]
      %v271 = vld [vmem:[%s232 + $0x40] sm:$0xff]
      %v272 = vld [vmem:[%s232 + $0x48] sm:$0xff]
      %v273 = vld [vmem:[%s232 + $0x50] sm:$0xff]
      %v274 = vld [vmem:[%s232 + $0x58] sm:$0xff]
      %v275 = vld [vmem:[%s232 + $0x60] sm:$0xff]
      %v276 = vld [vmem:[%s232 + $0x68] sm:$0xff]
      %v277 = vld [vmem:[%s232 + $0x70] sm:$0xff]
      %v278 = vld [vmem:[%s232 + $0x78] sm:$0xff]
      %v279 = vld [vmem:[%s232 + $0x80] sm:$0xff]
      %v280 = vld [vmem:[%s232 + $0x88] sm:$0xff]
      %v281 = vld [vmem:[%s232 + $0x90] sm:$0xff]
      %v282 = vld [vmem:[%s232 + $0x98] sm:$0xff]
      %v283 = vld [vmem:[%s232 + $0xa0] sm:$0xff]
      %v284 = vld [vmem:[%s232 + $0xa8] sm:$0xff]
      %v285 = vld [vmem:[%s232 + $0xb0] sm:$0xff]
      %v286 = vld [vmem:[%s232 + $0xb8] sm:$0xff]
      %v287 = vld [vmem:[%s232 + $0xc0] sm:$0xff]
      %v288 = vld [vmem:[%s232 + $0xc8] sm:$0xff]
      %v289 = vld [vmem:[%s232 + $0xd0] sm:$0xff]
      %v290 = vld [vmem:[%s232 + $0xd8] sm:$0xff]
      %v291 = vld [vmem:[%s232 + $0xe0] sm:$0xff]
      %v292 = vld [vmem:[%s232 + $0xe8] sm:$0xff]
      %v293 = vld [vmem:[%s232 + $0xf0] sm:$0xff]
      %v294 = vld [vmem:[%s232 + $0xf8] sm:$0xff]
      %v295 = vld [vmem:[%s232 + $0x100] sm:$0xff]
      %v296 = vld [vmem:[%s232 + $0x108] sm:$0xff]
      %v297 = vld [vmem:[%s232 + $0x110] sm:$0xff]
      %v298 = vld [vmem:[%s232 + $0x118] sm:$0xff]
      %v299 = vld [vmem:[%s232 + $0x120] sm:$0xff]
      %v300 = vld [vmem:[%s232 + $0x128] sm:$0xff]
      %v301 = vld [vmem:[%s232 + $0x130] sm:$0xff]
      %v302 = vld [vmem:[%s232 + $0x138] sm:$0xff]
      %v303 = vld [vmem:[%s232 + $0x140] sm:$0xff]
      %v304 = vld [vmem:[%s232 + $0x148] sm:$0xff]
      %v305 = vld [vmem:[%s232 + $0x150] sm:$0xff]
      %v306 = vld [vmem:[%s232 + $0x158] sm:$0xff]
      %v307 = vld [vmem:[%s232 + $0x160] sm:$0xff]
      %v308 = vld [vmem:[%s232 + $0x168] sm:$0xff]
      %v309 = vld [vmem:[%s232 + $0x170] sm:$0xff]
      %v310 = vld [vmem:[%s232 + $0x178] sm:$0xff]
      %v311 = vld [vmem:[%s232 + $0x180] sm:$0xff]
      %v312 = vld [vmem:[%s232 + $0x188] sm:$0xff]
      %v313 = vld [vmem:[%s232 + $0x190] sm:$0xff]
      %v314 = vld [vmem:[%s232 + $0x198] sm:$0xff]
      %v315 = vld [vmem:[%s232 + $0x1a0] sm:$0xff]
      %v316 = vld [vmem:[%s232 + $0x1a8] sm:$0xff]
      %v317 = vld [vmem:[%s232 + $0x1b0] sm:$0xff]
      %v318 = vld [vmem:[%s232 + $0x1b8] sm:$0xff]
      %v319 = vld [vmem:[%s232 + $0x1c0] sm:$0xff]
      %v320 = vld [vmem:[%s232 + $0x1c8] sm:$0xff]
      %v321 = vld [vmem:[%s232 + $0x1d0] sm:$0xff]
      %v322 = vld [vmem:[%s232 + $0x1d8] sm:$0xff]
      %v323 = vld [vmem:[%s232 + $0x1e0] sm:$0xff]
      %v324 = vld [vmem:[%s232 + $0x1e8] sm:$0xff]
      %v325 = vld [vmem:[%s232 + $0x1f0] sm:$0xff]
      %v326 = vld [vmem:[%s232 + $0x1f8] sm:$0xff]
      %v327 = vld [vmem:[%s232 + $0x200] sm:$0xff]
      %v328 = vld [vmem:[%s232 + $0x208] sm:$0xff]
      %v329 = vld [vmem:[%s232 + $0x210] sm:$0xff]
      %v330 = vld [vmem:[%s232 + $0x218] sm:$0xff]
      %v331 = vld [vmem:[%s232 + $0x220] sm:$0xff]
      %v332 = vld [vmem:[%s232 + $0x228] sm:$0xff]
      %v333 = vld [vmem:[%s232 + $0x230] sm:$0xff]
      %v334 = vld [vmem:[%s232 + $0x238] sm:$0xff]
      %v335 = vld [vmem:[%s232 + $0x240] sm:$0xff]
      %v336 = vld [vmem:[%s232 + $0x248] sm:$0xff]
      %v337 = vld [vmem:[%s232 + $0x250] sm:$0xff]
      %v338 = vld [vmem:[%s232 + $0x258] sm:$0xff]
      %v339 = vld [vmem:[%s232 + $0x260] sm:$0xff]
      %v340 = vld [vmem:[%s232 + $0x268] sm:$0xff]
      %v341 = vld [vmem:[%s232 + $0x270] sm:$0xff]
      %v342 = vld [vmem:[%s232 + $0x278] sm:$0xff]
      %v343 = vld [vmem:[%s232 + $0x280] sm:$0xff]
      %v344 = vld [vmem:[%s232 + $0x288] sm:$0xff]
      %v345 = vld [vmem:[%s232 + $0x290] sm:$0xff]
      %v346 = vld [vmem:[%s232 + $0x298] sm:$0xff]
      %v347 = vld [vmem:[%s232 + $0x2a0] sm:$0xff]
      %v348 = vld [vmem:[%s232 + $0x2a8] sm:$0xff]
      %v349 = vld [vmem:[%s232 + $0x2b0] sm:$0xff]
      %v350 = vld [vmem:[%s232 + $0x2b8] sm:$0xff]
      %v351 = vld [vmem:[%s232 + $0x2c0] sm:$0xff]
      %v352 = vld [vmem:[%s232 + $0x2c8] sm:$0xff]
      %v353 = vld [vmem:[%s232 + $0x2d0] sm:$0xff]
      %v354 = vld [vmem:[%s232 + $0x2d8] sm:$0xff]
      %v355 = vld [vmem:[%s232 + $0x2e0] sm:$0xff]
      %v356 = vld [vmem:[%s232 + $0x2e8] sm:$0xff]
      %v357 = vld [vmem:[%s232 + $0x2f0] sm:$0xff]
      %v358 = vld [vmem:[%s232 + $0x2f8] sm:$0xff]
      %v359 = vld [vmem:[%s232 + $0x300] sm:$0xff]
      %v360 = vld [vmem:[%s232 + $0x308] sm:$0xff]
      %v361 = vld [vmem:[%s232 + $0x310] sm:$0xff]
      %v362 = vld [vmem:[%s232 + $0x318] sm:$0xff]
      %v363 = vld [vmem:[%s232 + $0x320] sm:$0xff]
      %v364 = vld [vmem:[%s232 + $0x328] sm:$0xff]
      %v365 = vld [vmem:[%s232 + $0x330] sm:$0xff]
      %v366 = vld [vmem:[%s232 + $0x338] sm:$0xff]
      %v367 = vld [vmem:[%s232 + $0x340] sm:$0xff]
      %v368 = vld [vmem:[%s232 + $0x348] sm:$0xff]
      %v369 = vld [vmem:[%s232 + $0x350] sm:$0xff]
      %v370 = vld [vmem:[%s232 + $0x358] sm:$0xff]
      %v371 = vld [vmem:[%s232 + $0x360] sm:$0xff]
      %v372 = vld [vmem:[%s232 + $0x368] sm:$0xff]
      %v373 = vld [vmem:[%s232 + $0x370] sm:$0xff]
      %v374 = vld [vmem:[%s232 + $0x378] sm:$0xff]
      %v375 = vld [vmem:[%s232 + $0x380] sm:$0xff]
      %v376 = vld [vmem:[%s232 + $0x388] sm:$0xff]
      %v377 = vld [vmem:[%s232 + $0x390] sm:$0xff]
      %v378 = vld [vmem:[%s232 + $0x398] sm:$0xff]
      %v379 = vld [vmem:[%s232 + $0x3a0] sm:$0xff]
      %v380 = vld [vmem:[%s232 + $0x3a8] sm:$0xff]
      %v381 = vld [vmem:[%s232 + $0x3b0] sm:$0xff]
      %v382 = vld [vmem:[%s232 + $0x3b8] sm:$0xff]
      %v383 = vld [vmem:[%s232 + $0x3c0] sm:$0xff]
      %v384 = vld [vmem:[%s232 + $0x3c8] sm:$0xff]
      %v385 = vld [vmem:[%s232 + $0x3d0] sm:$0xff]
      %v386 = vld [vmem:[%s232 + $0x3d8] sm:$0xff]
      %v387 = vld [vmem:[%s232 + $0x3e0] sm:$0xff]
      %v388 = vld [vmem:[%s232 + $0x3e8] sm:$0xff]
      %v389 = vld [vmem:[%s232 + $0x3f0] sm:$0xff]
      %v390 = vld [vmem:[%s232 + $0x3f8] sm:$0xff]
      %v391 = vld [vmem:[%s232 + $0x400] sm:$0xff]
      %v392 = vld [vmem:[%s232 + $0x408] sm:$0xff]
      %v393 = vld [vmem:[%s232 + $0x410] sm:$0xff]
      %v394 = vld [vmem:[%s232 + $0x418] sm:$0xff]
      %v395 = vld [vmem:[%s232 + $0x420] sm:$0xff]
      %v396 = vld [vmem:[%s232 + $0x428] sm:$0xff]
      %v397 = vld [vmem:[%s232 + $0x430] sm:$0xff]
      %v398 = vld [vmem:[%s232 + $0x438] sm:$0xff]
      %v399 = vld [vmem:[%s232 + $0x440] sm:$0xff]
      %v400 = vld [vmem:[%s232 + $0x448] sm:$0xff]
      %v401 = vld [vmem:[%s232 + $0x450] sm:$0xff]
      %v402 = vld [vmem:[%s232 + $0x458] sm:$0xff]
      %v403 = vld [vmem:[%s232 + $0x460] sm:$0xff]
      %v404 = vld [vmem:[%s232 + $0x468] sm:$0xff]
      %v405 = vld [vmem:[%s232 + $0x470] sm:$0xff]
      %v406 = vld [vmem:[%s232 + $0x478] sm:$0xff]
      %v407 = vld [vmem:[%s232 + $0x480] sm:$0xf]
      %v408 = vld [vmem:[%s232 + $0x488] sm:$0xf]
      %v409 = vld [vmem:[%s232 + $0x490] sm:$0xf]
      %v410 = vld [vmem:[%s232 + $0x498] sm:$0xf]
      %v411 = vld [vmem:[%s232 + $0x4a0] sm:$0xf]
      %v412 = vld [vmem:[%s232 + $0x4a8] sm:$0xf]
      %v413 = vld [vmem:[%s244] sm:$0xff]
      %v414 = vld [vmem:[%s244 + $0x8] sm:$0xff]
      %v415 = vld [vmem:[%s244 + $0x10] sm:$0xff]
      %v416 = vld [vmem:[%s244 + $0x18] sm:$0xff]
      %v417 = vld [vmem:[%s244 + $0x20] sm:$0xff]
      %v418 = vld [vmem:[%s244 + $0x28] sm:$0xff]
      %v419 = vld [vmem:[%s244 + $0x30] sm:$0xff]
      %v420 = vld [vmem:[%s244 + $0x38] sm:$0xff]
      %v421 = vld [vmem:[%s244 + $0x40] sm:$0xff]
      %v422 = vld [vmem:[%s244 + $0x48] sm:$0xff]
      %v423 = vld [vmem:[%s244 + $0x50] sm:$0xff]
      %v424 = vld [vmem:[%s244 + $0x58] sm:$0xff]
      %v425 = vld [vmem:[%s244 + $0x60] sm:$0xff]
      %v426 = vld [vmem:[%s244 + $0x68] sm:$0xff]
      %v427 = vld [vmem:[%s244 + $0x70] sm:$0xff]
      %v428 = vld [vmem:[%s244 + $0x78] sm:$0xff]
      %v429 = vld [vmem:[%s244 + $0x80] sm:$0xff]
      %v430 = vld [vmem:[%s244 + $0x88] sm:$0xff]
      %v431 = vld [vmem:[%s244 + $0x90] sm:$0xff]
      %v432 = vld [vmem:[%s244 + $0x98] sm:$0xff]
      %v433 = vld [vmem:[%s244 + $0xa0] sm:$0xff]
      %v434 = vld [vmem:[%s244 + $0xa8] sm:$0xff]
      %v435 = vld [vmem:[%s244 + $0xb0] sm:$0xff]
      %v436 = vld [vmem:[%s244 + $0xb8] sm:$0xff]
      %v437 = vld [vmem:[%s244 + $0xc0] sm:$0xff]
      %v438 = vld [vmem:[%s244 + $0xc8] sm:$0xff]
      %v439 = vld [vmem:[%s244 + $0xd0] sm:$0xff]
      %v440 = vld [vmem:[%s244 + $0xd8] sm:$0xff]
      %v441 = vld [vmem:[%s244 + $0xe0] sm:$0xff]
      %v442 = vld [vmem:[%s244 + $0xe8] sm:$0xff]
      %v443 = vld [vmem:[%s244 + $0xf0] sm:$0xff]
      %v444 = vld [vmem:[%s244 + $0xf8] sm:$0xff]
      %v445 = vld [vmem:[%s244 + $0x100] sm:$0xff]
      %v446 = vld [vmem:[%s244 + $0x108] sm:$0xff]
      %v447 = vld [vmem:[%s244 + $0x110] sm:$0xff]
      %v448 = vld [vmem:[%s244 + $0x118] sm:$0xff]
      %v449 = vld [vmem:[%s244 + $0x120] sm:$0xff]
      %v450 = vld [vmem:[%s244 + $0x128] sm:$0xff]
      %v451 = vld [vmem:[%s244 + $0x130] sm:$0xff]
      %v452 = vld [vmem:[%s244 + $0x138] sm:$0xff]
      %v453 = vld [vmem:[%s244 + $0x140] sm:$0xff]
      %v454 = vld [vmem:[%s244 + $0x148] sm:$0xff]
      %v455 = vld [vmem:[%s244 + $0x150] sm:$0xff]
      %v456 = vld [vmem:[%s244 + $0x158] sm:$0xff]
      %v457 = vld [vmem:[%s244 + $0x160] sm:$0xff]
      %v458 = vld [vmem:[%s244 + $0x168] sm:$0xff]
      %v459 = vld [vmem:[%s244 + $0x170] sm:$0xff]
      %v460 = vld [vmem:[%s244 + $0x178] sm:$0xff]
      %v461 = vld [vmem:[%s244 + $0x180] sm:$0xff]
      %v462 = vld [vmem:[%s244 + $0x188] sm:$0xff]
      %v463 = vld [vmem:[%s244 + $0x190] sm:$0xff]
      %v464 = vld [vmem:[%s244 + $0x198] sm:$0xff]
      %v465 = vld [vmem:[%s244 + $0x1a0] sm:$0xff]
      %v466 = vld [vmem:[%s244 + $0x1a8] sm:$0xff]
      %v467 = vld [vmem:[%s244 + $0x1b0] sm:$0xff]
      %v468 = vld [vmem:[%s244 + $0x1b8] sm:$0xff]
      %v469 = vld [vmem:[%s244 + $0x1c0] sm:$0xff]
      %v470 = vld [vmem:[%s244 + $0x1c8] sm:$0xff]
      %v471 = vld [vmem:[%s244 + $0x1d0] sm:$0xff]
      %v472 = vld [vmem:[%s244 + $0x1d8] sm:$0xff]
      %v473 = vld [vmem:[%s244 + $0x1e0] sm:$0xff]
      %v474 = vld [vmem:[%s244 + $0x1e8] sm:$0xff]
      %v475 = vld [vmem:[%s244 + $0x1f0] sm:$0xff]
      %v476 = vld [vmem:[%s244 + $0x1f8] sm:$0xff]
      %v477 = vld [vmem:[%s244 + $0x200] sm:$0xff]
      %v478 = vld [vmem:[%s244 + $0x208] sm:$0xff]
      %v479 = vld [vmem:[%s244 + $0x210] sm:$0xff]
      %v480 = vld [vmem:[%s244 + $0x218] sm:$0xff]
      %v481 = vld [vmem:[%s244 + $0x220] sm:$0xff]
      %v482 = vld [vmem:[%s244 + $0x228] sm:$0xff]
      %v483 = vld [vmem:[%s244 + $0x230] sm:$0xff]
      %v484 = vld [vmem:[%s244 + $0x238] sm:$0xff]
      %v485 = vld [vmem:[%s244 + $0x240] sm:$0xff]
      %v486 = vld [vmem:[%s244 + $0x248] sm:$0xff]
      %v487 = vld [vmem:[%s244 + $0x250] sm:$0xff]
      %v488 = vld [vmem:[%s244 + $0x258] sm:$0xff]
      %v489 = vld [vmem:[%s244 + $0x260] sm:$0xff]
      %v490 = vld [vmem:[%s244 + $0x268] sm:$0xff]
      %v491 = vld [vmem:[%s244 + $0x270] sm:$0xff]
      %v492 = vld [vmem:[%s244 + $0x278] sm:$0xff]
      %v493 = vld [vmem:[%s244 + $0x280] sm:$0xff]
      %v494 = vld [vmem:[%s244 + $0x288] sm:$0xff]
      %v495 = vld [vmem:[%s244 + $0x290] sm:$0xff]
      %v496 = vld [vmem:[%s244 + $0x298] sm:$0xff]
      %v497 = vld [vmem:[%s244 + $0x2a0] sm:$0xff]
      %v498 = vld [vmem:[%s244 + $0x2a8] sm:$0xff]
      %v499 = vld [vmem:[%s244 + $0x2b0] sm:$0xff]
      %v500 = vld [vmem:[%s244 + $0x2b8] sm:$0xff]
      %v501 = vld [vmem:[%s244 + $0x2c0] sm:$0xff]
      %v502 = vld [vmem:[%s244 + $0x2c8] sm:$0xff]
      %v503 = vld [vmem:[%s244 + $0x2d0] sm:$0xff]
      %v504 = vld [vmem:[%s244 + $0x2d8] sm:$0xff]
      %v505 = vld [vmem:[%s244 + $0x2e0] sm:$0xff]
      %v506 = vld [vmem:[%s244 + $0x2e8] sm:$0xff]
      %v507 = vld [vmem:[%s244 + $0x2f0] sm:$0xff]
      %v508 = vld [vmem:[%s244 + $0x2f8] sm:$0xff]
      %v509 = vld [vmem:[%s244 + $0x300] sm:$0xff]
      %v510 = vld [vmem:[%s244 + $0x308] sm:$0xff]
      %v511 = vld [vmem:[%s244 + $0x310] sm:$0xff]
      %v512 = vld [vmem:[%s244 + $0x318] sm:$0xff]
      %v513 = vld [vmem:[%s244 + $0x320] sm:$0xff]
      %v514 = vld [vmem:[%s244 + $0x328] sm:$0xff]
      %v515 = vld [vmem:[%s244 + $0x330] sm:$0xff]
      %v516 = vld [vmem:[%s244 + $0x338] sm:$0xff]
      %v517 = vld [vmem:[%s244 + $0x340] sm:$0xff]
      %v518 = vld [vmem:[%s244 + $0x348] sm:$0xff]
      %v519 = vld [vmem:[%s244 + $0x350] sm:$0xff]
      %v520 = vld [vmem:[%s244 + $0x358] sm:$0xff]
      %v521 = vld [vmem:[%s244 + $0x360] sm:$0xff]
      %v522 = vld [vmem:[%s244 + $0x368] sm:$0xff]
      %v523 = vld [vmem:[%s244 + $0x370] sm:$0xff]
      %v524 = vld [vmem:[%s244 + $0x378] sm:$0xff]
      %v525 = vld [vmem:[%s244 + $0x380] sm:$0xff]
      %v526 = vld [vmem:[%s244 + $0x388] sm:$0xff]
      %v527 = vld [vmem:[%s244 + $0x390] sm:$0xff]
      %v528 = vld [vmem:[%s244 + $0x398] sm:$0xff]
      %v529 = vld [vmem:[%s244 + $0x3a0] sm:$0xff]
      %v530 = vld [vmem:[%s244 + $0x3a8] sm:$0xff]
      %v531 = vld [vmem:[%s244 + $0x3b0] sm:$0xff]
      %v532 = vld [vmem:[%s244 + $0x3b8] sm:$0xff]
      %v533 = vld [vmem:[%s244 + $0x3c0] sm:$0xff]
      %v534 = vld [vmem:[%s244 + $0x3c8] sm:$0xff]
      %v535 = vld [vmem:[%s244 + $0x3d0] sm:$0xff]
      %v536 = vld [vmem:[%s244 + $0x3d8] sm:$0xff]
      %v537 = vld [vmem:[%s244 + $0x3e0] sm:$0xff]
      %v538 = vld [vmem:[%s244 + $0x3e8] sm:$0xff]
      %v539 = vld [vmem:[%s244 + $0x3f0] sm:$0xff]
      %v540 = vld [vmem:[%s244 + $0x3f8] sm:$0xff]
      %v541 = vld [vmem:[%s244 + $0x400] sm:$0xff]
      %v542 = vld [vmem:[%s244 + $0x408] sm:$0xff]
      %v543 = vld [vmem:[%s244 + $0x410] sm:$0xff]
      %v544 = vld [vmem:[%s244 + $0x418] sm:$0xff]
      %v545 = vld [vmem:[%s244 + $0x420] sm:$0xff]
      %v546 = vld [vmem:[%s244 + $0x428] sm:$0xff]
      %v547 = vld [vmem:[%s244 + $0x430] sm:$0xff]
      %v548 = vld [vmem:[%s244 + $0x438] sm:$0xff]
      %v549 = vld [vmem:[%s244 + $0x440] sm:$0xff]
      %v550 = vld [vmem:[%s244 + $0x448] sm:$0xff]
      %v551 = vld [vmem:[%s244 + $0x450] sm:$0xff]
      %v552 = vld [vmem:[%s244 + $0x458] sm:$0xff]
      %v553 = vld [vmem:[%s244 + $0x460] sm:$0xff]
      %v554 = vld [vmem:[%s244 + $0x468] sm:$0xff]
      %v555 = vld [vmem:[%s244 + $0x470] sm:$0xff]
      %v556 = vld [vmem:[%s244 + $0x478] sm:$0xff]
      %v557 = vld [vmem:[%s244 + $0x480] sm:$0xf]
      %v558 = vld [vmem:[%s244 + $0x488] sm:$0xf]
      %v559 = vld [vmem:[%s244 + $0x490] sm:$0xf]
      %v560 = vld [vmem:[%s244 + $0x498] sm:$0xf]
      %v561 = vld [vmem:[%s244 + $0x4a0] sm:$0xf]
      %v562 = vld [vmem:[%s244 + $0x4a8] sm:$0xf]
      %v563 = vmul.f32 %v413, 0.5
      %v564 = vmul.f32 %v414, 0.5
      %v565 = vmul.f32 %v415, 0.5
      %v566 = vmul.f32 %v416, 0.5
      %v567 = vmul.f32 %v417, 0.5
      %v568 = vmul.f32 %v418, 0.5
      %v569 = vmul.f32 %v419, 0.5
      %v570 = vmul.f32 %v420, 0.5
      %v571 = vmul.f32 %v421, 0.5
      %v572 = vmul.f32 %v422, 0.5
      %v573 = vmul.f32 %v423, 0.5
      %v574 = vmul.f32 %v424, 0.5
      %v575 = vmul.f32 %v425, 0.5
      %v576 = vmul.f32 %v426, 0.5
      %v577 = vmul.f32 %v427, 0.5
      %v578 = vmul.f32 %v428, 0.5
      %v579 = vmul.f32 %v429, 0.5
      %v580 = vmul.f32 %v430, 0.5
      %v581 = vmul.f32 %v431, 0.5
      %v582 = vmul.f32 %v432, 0.5
      %v583 = vmul.f32 %v433, 0.5
      %v584 = vmul.f32 %v434, 0.5
      %v585 = vmul.f32 %v435, 0.5
      %v586 = vmul.f32 %v436, 0.5
      %v587 = vmul.f32 %v437, 0.5
      %v588 = vmul.f32 %v438, 0.5
      %v589 = vmul.f32 %v439, 0.5
      %v590 = vmul.f32 %v440, 0.5
      %v591 = vmul.f32 %v441, 0.5
      %v592 = vmul.f32 %v442, 0.5
      %v593 = vmul.f32 %v443, 0.5
      %v594 = vmul.f32 %v444, 0.5
      %v595 = vmul.f32 %v445, 0.5
      %v596 = vmul.f32 %v446, 0.5
      %v597 = vmul.f32 %v447, 0.5
      %v598 = vmul.f32 %v448, 0.5
      %v599 = vmul.f32 %v449, 0.5
      %v600 = vmul.f32 %v450, 0.5
      %v601 = vmul.f32 %v451, 0.5
      %v602 = vmul.f32 %v452, 0.5
      %v603 = vmul.f32 %v453, 0.5
      %v604 = vmul.f32 %v454, 0.5
      %v605 = vmul.f32 %v455, 0.5
      %v606 = vmul.f32 %v456, 0.5
      %v607 = vmul.f32 %v457, 0.5
      %v608 = vmul.f32 %v458, 0.5
      %v609 = vmul.f32 %v459, 0.5
      %v610 = vmul.f32 %v460, 0.5
      %v611 = vmul.f32 %v461, 0.5
      %v612 = vmul.f32 %v462, 0.5
      %v613 = vmul.f32 %v463, 0.5
      %v614 = vmul.f32 %v464, 0.5
      %v615 = vmul.f32 %v465, 0.5
      %v616 = vmul.f32 %v466, 0.5
      %v617 = vmul.f32 %v467, 0.5
      %v618 = vmul.f32 %v468, 0.5
      %v619 = vmul.f32 %v469, 0.5
      %v620 = vmul.f32 %v470, 0.5
      %v621 = vmul.f32 %v471, 0.5
      %v622 = vmul.f32 %v472, 0.5
      %v623 = vmul.f32 %v473, 0.5
      %v624 = vmul.f32 %v474, 0.5
      %v625 = vmul.f32 %v475, 0.5
      %v626 = vmul.f32 %v476, 0.5
      %v627 = vmul.f32 %v477, 0.5
      %v628 = vmul.f32 %v478, 0.5
      %v629 = vmul.f32 %v479, 0.5
      %v630 = vmul.f32 %v480, 0.5
      %v631 = vmul.f32 %v481, 0.5
      %v632 = vmul.f32 %v482, 0.5
      %v633 = vmul.f32 %v483, 0.5
      %v634 = vmul.f32 %v484, 0.5
      %v635 = vmul.f32 %v485, 0.5
      %v636 = vmul.f32 %v486, 0.5
      %v637 = vmul.f32 %v487, 0.5
      %v638 = vmul.f32 %v488, 0.5
      %v639 = vmul.f32 %v489, 0.5
      %v640 = vmul.f32 %v490, 0.5
      %v641 = vmul.f32 %v491, 0.5
      %v642 = vmul.f32 %v492, 0.5
      %v643 = vmul.f32 %v493, 0.5
      %v644 = vmul.f32 %v494, 0.5
      %v645 = vmul.f32 %v495, 0.5
      %v646 = vmul.f32 %v496, 0.5
      %v647 = vmul.f32 %v497, 0.5
      %v648 = vmul.f32 %v498, 0.5
      %v649 = vmul.f32 %v499, 0.5
      %v650 = vmul.f32 %v500, 0.5
      %v651 = vmul.f32 %v501, 0.5
      %v652 = vmul.f32 %v502, 0.5
      %v653 = vmul.f32 %v503, 0.5
      %v654 = vmul.f32 %v504, 0.5
      %v655 = vmul.f32 %v505, 0.5
      %v656 = vmul.f32 %v506, 0.5
      %v657 = vmul.f32 %v507, 0.5
      %v658 = vmul.f32 %v508, 0.5
      %v659 = vmul.f32 %v509, 0.5
      %v660 = vmul.f32 %v510, 0.5
      %v661 = vmul.f32 %v511, 0.5
      %v662 = vmul.f32 %v512, 0.5
      %v663 = vmul.f32 %v513, 0.5
      %v664 = vmul.f32 %v514, 0.5
      %v665 = vmul.f32 %v515, 0.5
      %v666 = vmul.f32 %v516, 0.5
      %v667 = vmul.f32 %v517, 0.5
      %v668 = vmul.f32 %v518, 0.5
      %v669 = vmul.f32 %v519, 0.5
      %v670 = vmul.f32 %v520, 0.5
      %v671 = vmul.f32 %v521, 0.5
      %v672 = vmul.f32 %v522, 0.5
      %v673 = vmul.f32 %v523, 0.5
      %v674 = vmul.f32 %v524, 0.5
      %v675 = vmul.f32 %v525, 0.5
      %v676 = vmul.f32 %v526, 0.5
      %v677 = vmul.f32 %v527, 0.5
      %v678 = vmul.f32 %v528, 0.5
      %v679 = vmul.f32 %v529, 0.5
      %v680 = vmul.f32 %v530, 0.5
      %v681 = vmul.f32 %v531, 0.5
      %v682 = vmul.f32 %v532, 0.5
      %v683 = vmul.f32 %v533, 0.5
      %v684 = vmul.f32 %v534, 0.5
      %v685 = vmul.f32 %v535, 0.5
      %v686 = vmul.f32 %v536, 0.5
      %v687 = vmul.f32 %v537, 0.5
      %v688 = vmul.f32 %v538, 0.5
      %v689 = vmul.f32 %v539, 0.5
      %v690 = vmul.f32 %v540, 0.5
      %v691 = vmul.f32 %v541, 0.5
      %v692 = vmul.f32 %v542, 0.5
      %v693 = vmul.f32 %v543, 0.5
      %v694 = vmul.f32 %v544, 0.5
      %v695 = vmul.f32 %v545, 0.5
      %v696 = vmul.f32 %v546, 0.5
      %v697 = vmul.f32 %v547, 0.5
      %v698 = vmul.f32 %v548, 0.5
      %v699 = vmul.f32 %v549, 0.5
      %v700 = vmul.f32 %v550, 0.5
      %v701 = vmul.f32 %v551, 0.5
      %v702 = vmul.f32 %v552, 0.5
      %v703 = vmul.f32 %v553, 0.5
      %v704 = vmul.f32 %v554, 0.5
      %v705 = vmul.f32 %v555, 0.5
      %v706 = vmul.f32 %v556, 0.5
      %v707 = vmul.f32 %v557, 0.5
      %v708 = vmul.f32 %v558, 0.5
      %v709 = vmul.f32 %v559, 0.5
      %v710 = vmul.f32 %v560, 0.5
      %v711 = vmul.f32 %v561, 0.5
      %v712 = vmul.f32 %v562, 0.5
      %v713 = vadd.f32 %v263, %v563
      %v714 = vadd.f32 %v264, %v564
      %v715 = vadd.f32 %v265, %v565
      %v716 = vadd.f32 %v266, %v566
      %v717 = vadd.f32 %v267, %v567
      %v718 = vadd.f32 %v268, %v568
      %v719 = vadd.f32 %v269, %v569
      %v720 = vadd.f32 %v270, %v570
      %v721 = vadd.f32 %v271, %v571
      %v722 = vadd.f32 %v272, %v572
      %v723 = vadd.f32 %v273, %v573
      %v724 = vadd.f32 %v274, %v574
      %v725 = vadd.f32 %v275, %v575
      %v726 = vadd.f32 %v276, %v576
      %v727 = vadd.f32 %v277, %v577
      %v728 = vadd.f32 %v278, %v578
      %v729 = vadd.f32 %v279, %v579
      %v730 = vadd.f32 %v280, %v580
      %v731 = vadd.f32 %v281, %v581
      %v732 = vadd.f32 %v282, %v582
      %v733 = vadd.f32 %v283, %v583
      %v734 = vadd.f32 %v284, %v584
      %v735 = vadd.f32 %v285, %v585
      %v736 = vadd.f32 %v286, %v586
      %v737 = vadd.f32 %v287, %v587
      %v738 = vadd.f32 %v288, %v588
      %v739 = vadd.f32 %v289, %v589
      %v740 = vadd.f32 %v290, %v590
      %v741 = vadd.f32 %v291, %v591
      %v742 = vadd.f32 %v292, %v592
      %v743 = vadd.f32 %v293, %v593
      %v744 = vadd.f32 %v294, %v594
      %v745 = vadd.f32 %v295, %v595
      %v746 = vadd.f32 %v296, %v596
      %v747 = vadd.f32 %v297, %v597
      %v748 = vadd.f32 %v298, %v598
      %v749 = vadd.f32 %v299, %v599
      %v750 = vadd.f32 %v300, %v600
      %v751 = vadd.f32 %v301, %v601
      %v752 = vadd.f32 %v302, %v602
      %v753 = vadd.f32 %v303, %v603
      %v754 = vadd.f32 %v304, %v604
      %v755 = vadd.f32 %v305, %v605
      %v756 = vadd.f32 %v306, %v606
      %v757 = vadd.f32 %v307, %v607
      %v758 = vadd.f32 %v308, %v608
      %v759 = vadd.f32 %v309, %v609
      %v760 = vadd.f32 %v310, %v610
      %v761 = vadd.f32 %v311, %v611
      %v762 = vadd.f32 %v312, %v612
      %v763 = vadd.f32 %v313, %v613
      %v764 = vadd.f32 %v314, %v614
      %v765 = vadd.f32 %v315, %v615
      %v766 = vadd.f32 %v316, %v616
      %v767 = vadd.f32 %v317, %v617
      %v768 = vadd.f32 %v318, %v618
      %v769 = vadd.f32 %v319, %v619
      %v770 = vadd.f32 %v320, %v620
      %v771 = vadd.f32 %v321, %v621
      %v772 = vadd.f32 %v322, %v622
      %v773 = vadd.f32 %v323, %v623
      %v774 = vadd.f32 %v324, %v624
      %v775 = vadd.f32 %v325, %v625
      %v776 = vadd.f32 %v326, %v626
      %v777 = vadd.f32 %v327, %v627
      %v778 = vadd.f32 %v328, %v628
      %v779 = vadd.f32 %v329, %v629
      %v780 = vadd.f32 %v330, %v630
      %v781 = vadd.f32 %v331, %v631
      %v782 = vadd.f32 %v332, %v632
      %v783 = vadd.f32 %v333, %v633
      %v784 = vadd.f32 %v334, %v634
      %v785 = vadd.f32 %v335, %v635
      %v786 = vadd.f32 %v336, %v636
      %v787 = vadd.f32 %v337, %v637
      %v788 = vadd.f32 %v338, %v638
      %v789 = vadd.f32 %v339, %v639
      %v790 = vadd.f32 %v340, %v640
      %v791 = vadd.f32 %v341, %v641
      %v792 = vadd.f32 %v342, %v642
      %v793 = vadd.f32 %v343, %v643
      %v794 = vadd.f32 %v344, %v644
      %v795 = vadd.f32 %v345, %v645
      %v796 = vadd.f32 %v346, %v646
      %v797 = vadd.f32 %v347, %v647
      %v798 = vadd.f32 %v348, %v648
      %v799 = vadd.f32 %v349, %v649
      %v800 = vadd.f32 %v350, %v650
      %v801 = vadd.f32 %v351, %v651
      %v802 = vadd.f32 %v352, %v652
      %v803 = vadd.f32 %v353, %v653
      %v804 = vadd.f32 %v354, %v654
      %v805 = vadd.f32 %v355, %v655
      %v806 = vadd.f32 %v356, %v656
      %v807 = vadd.f32 %v357, %v657
      %v808 = vadd.f32 %v358, %v658
      %v809 = vadd.f32 %v359, %v659
      %v810 = vadd.f32 %v360, %v660
      %v811 = vadd.f32 %v361, %v661
      %v812 = vadd.f32 %v362, %v662
      %v813 = vadd.f32 %v363, %v663
      %v814 = vadd.f32 %v364, %v664
      %v815 = vadd.f32 %v365, %v665
      %v816 = vadd.f32 %v366, %v666
      %v817 = vadd.f32 %v367, %v667
      %v818 = vadd.f32 %v368, %v668
      %v819 = vadd.f32 %v369, %v669
      %v820 = vadd.f32 %v370, %v670
      %v821 = vadd.f32 %v371, %v671
      %v822 = vadd.f32 %v372, %v672
      %v823 = vadd.f32 %v373, %v673
      %v824 = vadd.f32 %v374, %v674
      %v825 = vadd.f32 %v375, %v675
      %v826 = vadd.f32 %v376, %v676
      %v827 = vadd.f32 %v377, %v677
      %v828 = vadd.f32 %v378, %v678
      %v829 = vadd.f32 %v379, %v679
      %v830 = vadd.f32 %v380, %v680
      %v831 = vadd.f32 %v381, %v681
      %v832 = vadd.f32 %v382, %v682
      %v833 = vadd.f32 %v383, %v683
      %v834 = vadd.f32 %v384, %v684
      %v835 = vadd.f32 %v385, %v685
      %v836 = vadd.f32 %v386, %v686
      %v837 = vadd.f32 %v387, %v687
      %v838 = vadd.f32 %v388, %v688
      %v839 = vadd.f32 %v389, %v689
      %v840 = vadd.f32 %v390, %v690
      %v841 = vadd.f32 %v391, %v691
      %v842 = vadd.f32 %v392, %v692
      %v843 = vadd.f32 %v393, %v693
      %v844 = vadd.f32 %v394, %v694
      %v845 = vadd.f32 %v395, %v695
      %v846 = vadd.f32 %v396, %v696
      %v847 = vadd.f32 %v397, %v697
      %v848 = vadd.f32 %v398, %v698
      %v849 = vadd.f32 %v399, %v699
      %v850 = vadd.f32 %v400, %v700
      %v851 = vadd.f32 %v401, %v701
      %v852 = vadd.f32 %v402, %v702
      %v853 = vadd.f32 %v403, %v703
      %v854 = vadd.f32 %v404, %v704
      %v855 = vadd.f32 %v405, %v705
      %v856 = vadd.f32 %v406, %v706
      %v857 = vadd.f32 %v407, %v707
      %v858 = vadd.f32 %v408, %v708
      %v859 = vadd.f32 %v409, %v709
      %v860 = vadd.f32 %v410, %v710
      %v861 = vadd.f32 %v411, %v711
      %v862 = vadd.f32 %v412, %v712
      %863 = vst [vmem:[%s260] sm:$0xff] %v713
      %864 = vst [vmem:[%s260 + $0x8] sm:$0xff] %v714
      %865 = vst [vmem:[%s260 + $0x10] sm:$0xff] %v715
      %866 = vst [vmem:[%s260 + $0x18] sm:$0xff] %v716
      %867 = vst [vmem:[%s260 + $0x20] sm:$0xff] %v717
      %868 = vst [vmem:[%s260 + $0x28] sm:$0xff] %v718
      %869 = vst [vmem:[%s260 + $0x30] sm:$0xff] %v719
      %870 = vst [vmem:[%s260 + $0x38] sm:$0xff] %v720
      %871 = vst [vmem:[%s260 + $0x40] sm:$0xff] %v721
      %872 = vst [vmem:[%s260 + $0x48] sm:$0xff] %v722
      %873 = vst [vmem:[%s260 + $0x50] sm:$0xff] %v723
      %874 = vst [vmem:[%s260 + $0x58] sm:$0xff] %v724
      %875 = vst [vmem:[%s260 + $0x60] sm:$0xff] %v725
      %876 = vst [vmem:[%s260 + $0x68] sm:$0xff] %v726
      %877 = vst [vmem:[%s260 + $0x70] sm:$0xff] %v727
      %878 = vst [vmem:[%s260 + $0x78] sm:$0xff] %v728
      %879 = vst [vmem:[%s260 + $0x80] sm:$0xff] %v729
      %880 = vst [vmem:[%s260 + $0x88] sm:$0xff] %v730
      %881 = vst [vmem:[%s260 + $0x90] sm:$0xff] %v731
      %882 = vst [vmem:[%s260 + $0x98] sm:$0xff] %v732
      %883 = vst [vmem:[%s260 + $0xa0] sm:$0xff] %v733
      %884 = vst [vmem:[%s260 + $0xa8] sm:$0xff] %v734
      %885 = vst [vmem:[%s260 + $0xb0] sm:$0xff] %v735
      %886 = vst [vmem:[%s260 + $0xb8] sm:$0xff] %v736
      %887 = vst [vmem:[%s260 + $0xc0] sm:$0xff] %v737
      %888 = vst [vmem:[%s260 + $0xc8] sm:$0xff] %v738
      %889 = vst [vmem:[%s260 + $0xd0] sm:$0xff] %v739
      %890 = vst [vmem:[%s260 + $0xd8] sm:$0xff] %v740
      %891 = vst [vmem:[%s260 + $0xe0] sm:$0xff] %v741
      %892 = vst [vmem:[%s260 + $0xe8] sm:$0xff] %v742
      %893 = vst [vmem:[%s260 + $0xf0] sm:$0xff] %v743
      %894 = vst [vmem:[%s260 + $0xf8] sm:$0xff] %v744
      %895 = vst [vmem:[%s260 + $0x100] sm:$0xff] %v745
      %896 = vst [vmem:[%s260 + $0x108] sm:$0xff] %v746
      %897 = vst [vmem:[%s260 + $0x110] sm:$0xff] %v747
      %898 = vst [vmem:[%s260 + $0x118] sm:$0xff] %v748
      %899 = vst [vmem:[%s260 + $0x120] sm:$0xff] %v749
      %900 = vst [vmem:[%s260 + $0x128] sm:$0xff] %v750
      %901 = vst [vmem:[%s260 + $0x130] sm:$0xff] %v751
      %902 = vst [vmem:[%s260 + $0x138] sm:$0xff] %v752
      %903 = vst [vmem:[%s260 + $0x140] sm:$0xff] %v753
      %904 = vst [vmem:[%s260 + $0x148] sm:$0xff] %v754
      %905 = vst [vmem:[%s260 + $0x150] sm:$0xff] %v755
      %906 = vst [vmem:[%s260 + $0x158] sm:$0xff] %v756
      %907 = vst [vmem:[%s260 + $0x160] sm:$0xff] %v757
      %908 = vst [vmem:[%s260 + $0x168] sm:$0xff] %v758
      %909 = vst [vmem:[%s260 + $0x170] sm:$0xff] %v759
      %910 = vst [vmem:[%s260 + $0x178] sm:$0xff] %v760
      %911 = vst [vmem:[%s260 + $0x180] sm:$0xff] %v761
      %912 = vst [vmem:[%s260 + $0x188] sm:$0xff] %v762
      %913 = vst [vmem:[%s260 + $0x190] sm:$0xff] %v763
      %914 = vst [vmem:[%s260 + $0x198] sm:$0xff] %v764
      %915 = vst [vmem:[%s260 + $0x1a0] sm:$0xff] %v765
      %916 = vst [vmem:[%s260 + $0x1a8] sm:$0xff] %v766
      %917 = vst [vmem:[%s260 + $0x1b0] sm:$0xff] %v767
      %918 = vst [vmem:[%s260 + $0x1b8] sm:$0xff] %v768
      %919 = vst [vmem:[%s260 + $0x1c0] sm:$0xff] %v769
      %920 = vst [vmem:[%s260 + $0x1c8] sm:$0xff] %v770
      %921 = vst [vmem:[%s260 + $0x1d0] sm:$0xff] %v771
      %922 = vst [vmem:[%s260 + $0x1d8] sm:$0xff] %v772
      %923 = vst [vmem:[%s260 + $0x1e0] sm:$0xff] %v773
      %924 = vst [vmem:[%s260 + $0x1e8] sm:$0xff] %v774
      %925 = vst [vmem:[%s260 + $0x1f0] sm:$0xff] %v775
      %926 = vst [vmem:[%s260 + $0x1f8] sm:$0xff] %v776
      %927 = vst [vmem:[%s260 + $0x200] sm:$0xff] %v777
      %928 = vst [vmem:[%s260 + $0x208] sm:$0xff] %v778
      %929 = vst [vmem:[%s260 + $0x210] sm:$0xff] %v779
      %930 = vst [vmem:[%s260 + $0x218] sm:$0xff] %v780
      %931 = vst [vmem:[%s260 + $0x220] sm:$0xff] %v781
      %932 = vst [vmem:[%s260 + $0x228] sm:$0xff] %v782
      %933 = vst [vmem:[%s260 + $0x230] sm:$0xff] %v783
      %934 = vst [vmem:[%s260 + $0x238] sm:$0xff] %v784
      %935 = vst [vmem:[%s260 + $0x240] sm:$0xff] %v785
      %936 = vst [vmem:[%s260 + $0x248] sm:$0xff] %v786
      %937 = vst [vmem:[%s260 + $0x250] sm:$0xff] %v787
      %938 = vst [vmem:[%s260 + $0x258] sm:$0xff] %v788
      %939 = vst [vmem:[%s260 + $0x260] sm:$0xff] %v789
      %940 = vst [vmem:[%s260 + $0x268] sm:$0xff] %v790
      %941 = vst [vmem:[%s260 + $0x270] sm:$0xff] %v791
      %942 = vst [vmem:[%s260 + $0x278] sm:$0xff] %v792
      %943 = vst [vmem:[%s260 + $0x280] sm:$0xff] %v793
      %944 = vst [vmem:[%s260 + $0x288] sm:$0xff] %v794
      %945 = vst [vmem:[%s260 + $0x290] sm:$0xff] %v795
      %946 = vst [vmem:[%s260 + $0x298] sm:$0xff] %v796
      %947 = vst [vmem:[%s260 + $0x2a0] sm:$0xff] %v797
      %948 = vst [vmem:[%s260 + $0x2a8] sm:$0xff] %v798
      %949 = vst [vmem:[%s260 + $0x2b0] sm:$0xff] %v799
      %950 = vst [vmem:[%s260 + $0x2b8] sm:$0xff] %v800
      %951 = vst [vmem:[%s260 + $0x2c0] sm:$0xff] %v801
      %952 = vst [vmem:[%s260 + $0x2c8] sm:$0xff] %v802
      %953 = vst [vmem:[%s260 + $0x2d0] sm:$0xff] %v803
      %954 = vst [vmem:[%s260 + $0x2d8] sm:$0xff] %v804
      %955 = vst [vmem:[%s260 + $0x2e0] sm:$0xff] %v805
      %956 = vst [vmem:[%s260 + $0x2e8] sm:$0xff] %v806
      %957 = vst [vmem:[%s260 + $0x2f0] sm:$0xff] %v807
      %958 = vst [vmem:[%s260 + $0x2f8] sm:$0xff] %v808
      %959 = vst [vmem:[%s260 + $0x300] sm:$0xff] %v809
      %960 = vst [vmem:[%s260 + $0x308] sm:$0xff] %v810
      %961 = vst [vmem:[%s260 + $0x310] sm:$0xff] %v811
      %962 = vst [vmem:[%s260 + $0x318] sm:$0xff] %v812
      %963 = vst [vmem:[%s260 + $0x320] sm:$0xff] %v813
      %964 = vst [vmem:[%s260 + $0x328] sm:$0xff] %v814
      %965 = vst [vmem:[%s260 + $0x330] sm:$0xff] %v815
      %966 = vst [vmem:[%s260 + $0x338] sm:$0xff] %v816
      %967 = vst [vmem:[%s260 + $0x340] sm:$0xff] %v817
      %968 = vst [vmem:[%s260 + $0x348] sm:$0xff] %v818
      %969 = vst [vmem:[%s260 + $0x350] sm:$0xff] %v819
      %970 = vst [vmem:[%s260 + $0x358] sm:$0xff] %v820
      %971 = vst [vmem:[%s260 + $0x360] sm:$0xff] %v821
      %972 = vst [vmem:[%s260 + $0x368] sm:$0xff] %v822
      %973 = vst [vmem:[%s260 + $0x370] sm:$0xff] %v823
      %974 = vst [vmem:[%s260 + $0x378] sm:$0xff] %v824
      %975 = vst [vmem:[%s260 + $0x380] sm:$0xff] %v825
      %976 = vst [vmem:[%s260 + $0x388] sm:$0xff] %v826
      %977 = vst [vmem:[%s260 + $0x390] sm:$0xff] %v827
      %978 = vst [vmem:[%s260 + $0x398] sm:$0xff] %v828
      %979 = vst [vmem:[%s260 + $0x3a0] sm:$0xff] %v829
      %980 = vst [vmem:[%s260 + $0x3a8] sm:$0xff] %v830
      %981 = vst [vmem:[%s260 + $0x3b0] sm:$0xff] %v831
      %982 = vst [vmem:[%s260 + $0x3b8] sm:$0xff] %v832
      %983 = vst [vmem:[%s260 + $0x3c0] sm:$0xff] %v833
      %984 = vst [vmem:[%s260 + $0x3c8] sm:$0xff] %v834
      %985 = vst [vmem:[%s260 + $0x3d0] sm:$0xff] %v835
      %986 = vst [vmem:[%s260 + $0x3d8] sm:$0xff] %v836
      %987 = vst [vmem:[%s260 + $0x3e0] sm:$0xff] %v837
      %988 = vst [vmem:[%s260 + $0x3e8] sm:$0xff] %v838
      %989 = vst [vmem:[%s260 + $0x3f0] sm:$0xff] %v839
      %990 = vst [vmem:[%s260 + $0x3f8] sm:$0xff] %v840
      %991 = vst [vmem:[%s260 + $0x400] sm:$0xff] %v841
      %992 = vst [vmem:[%s260 + $0x408] sm:$0xff] %v842
      %993 = vst [vmem:[%s260 + $0x410] sm:$0xff] %v843
      %994 = vst [vmem:[%s260 + $0x418] sm:$0xff] %v844
      %995 = vst [vmem:[%s260 + $0x420] sm:$0xff] %v845
      %996 = vst [vmem:[%s260 + $0x428] sm:$0xff] %v846
      %997 = vst [vmem:[%s260 + $0x430] sm:$0xff] %v847
      %998 = vst [vmem:[%s260 + $0x438] sm:$0xff] %v848
      %999 = vst [vmem:[%s260 + $0x440] sm:$0xff] %v849
      %1000 = vst [vmem:[%s260 + $0x448] sm:$0xff] %v850
      %1001 = vst [vmem:[%s260 + $0x450] sm:$0xff] %v851
      %1002 = vst [vmem:[%s260 + $0x458] sm:$0xff] %v852
      %1003 = vst [vmem:[%s260 + $0x460] sm:$0xff] %v853
      %1004 = vst [vmem:[%s260 + $0x468] sm:$0xff] %v854
      %1005 = vst [vmem:[%s260 + $0x470] sm:$0xff] %v855
      %1006 = vst [vmem:[%s260 + $0x478] sm:$0xff] %v856
      %1007 = vst [vmem:[%s260 + $0x480] sm:$0xf] %v857
      %1008 = vst [vmem:[%s260 + $0x488] sm:$0xf] %v858
      %1009 = vst [vmem:[%s260 + $0x490] sm:$0xf] %v859
      %1010 = vst [vmem:[%s260 + $0x498] sm:$0xf] %v860
      %1011 = vst [vmem:[%s260 + $0x4a0] sm:$0xf] %v861
      %1012 = vst [vmem:[%s260 + $0x4a8] sm:$0xf] %v862
      %s1013 = smul.u32 25, %s19
      %s1014 = smul.u32 6, %s20
      %p1015 = scmp.lt.s32.totalorder %s18, 1
      %s1016 = scalar_select %p1015, %s18, 1
      %p1017 = scmp.lt.s32.totalorder %s1013, 24
      %s1018 = scalar_select %p1017, %s1013, 24
      %p1019 = scmp.lt.s32.totalorder %s1014, 5
      %s1020 = scalar_select %p1019, %s1014, 5
      %s1021 = smul.addr %s1018, 6
      %s1022 = sadd.s32 %s1020, %s1021
      %s1023 = smul.addr %s1016, 150
      %s1024 = sadd.s32 %s1022, %s1023
      %s1025 = smul.addr %s1024, 8
      %s1026 = scalar_lea.vmem %s2, %s1025
      // Predicated region
      $region29: #{positional_encoder_forward.1} parent=27 // pred_check
        %p1027 = pneg %p112
      $region30: #{positional_encoder_forward.1} parent=27 // pred_check_branch
        %1029 = sbr.rel (%p1027) target = $region32
      $region31: #{positional_encoder_forward.1} parent=27 // pred_region
        %s1030 = smul.u32 25, %s19
        %s1031 = smul.u32 6, %s20
      $region32: #{positional_encoder_forward.1} parent=27 // pred_fallthru
        _
    $region28: #{positional_encoder_forward.1} parent=5 // pred_fallthru
      _
    %p1032 = scmp.le.s32.totalorder 2, %s8
    // Predicated region
    $region33: #{positional_encoder_forward.1} parent=5 // pred_check
      %p1033 = pneg %p1032
    $region34: #{positional_encoder_forward.1} parent=5 // pred_check_branch
      %1035 = sbr.rel (%p1033) target = $region36
    $region35: #{positional_encoder_forward.1} parent=5 // pred_region
      %s1036 = ssub.s32 %s8, 2
      // Predicated region
      $region37: #{positional_encoder_forward.1} parent=35 // pred_check
        %p1037 = pneg %p118
      $region38: #{positional_encoder_forward.1} parent=35 // pred_check_branch
        %1039 = sbr.rel (%p1037) target = $region40
      $region39: #{positional_encoder_forward.1} parent=35 // pred_region
        %s1040 = smul.u32 25, %s22
        %s1041 = smul.u32 6, %s23
        %p1042 = scmp.lt.s32.totalorder %s21, 1
        %s1043 = scalar_select %p1042, %s21, 1
        %p1044 = scmp.lt.s32.totalorder %s1040, 24
        %s1045 = scalar_select %p1044, %s1040, 24
        %p1046 = scmp.lt.s32.totalorder %s1041, 5
        %s1047 = scalar_select %p1046, %s1041, 5
        %s1048 = smul.addr %s1045, 6
        %s1049 = sadd.s32 %s1047, %s1048
        %s1050 = smul.addr %s1043, 150
        %s1051 = sadd.s32 %s1049, %s1050
        %s1052 = smul.addr %s1051, 8
        %s1053 = scalar_lea.vmem %s2, %s1052
      $region40: #{positional_encoder_forward.1} parent=35 // pred_fallthru
        _
    $region36: #{positional_encoder_forward.1} parent=5 // pred_fallthru
      _
  $region6: #{positional_encoder_forward.1} parent=0 // loop_footer
    %s12 = sadd.s32 1, %s8
  $region7: #{positional_encoder_forward.1} parent=0 // loop_footer_branch
    %7 = sbr.rel target = $region3
  $region8: #{positional_encoder_forward.1} parent=0 // loop_exit
    _

</llo_original>
